<compile_context>
chip_gen: v6e
topology: v6e:2x2x1
jax: 0.10.0
libtpu: 0.0.40
codegen_flags: <defaults>
</compile_context>

<pallas_src>
import jax
import jax.numpy as jnp
from jax.experimental import pallas as pl
from jax.experimental.pallas import tpu as pltpu


def _attack_add_kernel(x_ref, a_ref, o_ref):
    # x_ref, o_ref: (TB, W, n) slab of flattened (batch*utterance) rows
    # a_ref:        (W, n) attack parameter, resident in VMEM across all grid steps
    o_ref[...] = x_ref[...] + a_ref[...]  # (W, n) broadcasts over the leading TB axis


_MIN_PALLAS_BYTES = 512 * 1024  # below this, a plain XLA add beats kernel launch/step overhead
_MIN_STEPS = 8                  # keep >= this many grid steps so double-buffering overlaps
_MIN_TB_ROWS = 128              # never shrink a block below ~this many rows (~512 KiB @ (8,128) f32)


def bespoke_attack_forward(x, attack, *, target_block_bytes=2 << 20, donate_x=False):
    """x: [N, U, W, n];  attack: [W, n]  ->  x + attack (broadcast over N, U)."""
    N, U, W, n = x.shape
    assert attack.shape == (W, n)
    assert attack.dtype == x.dtype

    NU = N * U
    itemsize = jnp.dtype(x.dtype).itemsize
    row_bytes = W * n * itemsize
    total_bytes = NU * row_bytes

    # Small-input fallback: fixed pallas_call + per-step cost (~0.35 us/step + launch)
    # dominates for tiny inputs; the XLA broadcast add is strictly faster and removes
    # the degenerate tb=NU, grid=(1,) case.
    if total_bytes < _MIN_PALLAS_BYTES:
        return x + attack[None, None, :, :]

    x_flat = x.reshape(NU, W, n)  # contiguous reshape — free

    # ~2 MiB per block buffer -> ~8 MiB for double-buffered in + out; fits v5e's
    # 16 MiB default scoped VMEM and leaves headroom on v6e/v7x (32 MiB default).
    # If target_block_bytes is raised past ~4 MiB, set vmem_limit_bytes explicitly.
    tb = max(1, target_block_bytes // row_bytes)
    tb = min(tb, NU)
    # Keep at least _MIN_STEPS grid steps so prefetch/writeback stay hidden and the
    # "parallel" axis can actually be split across v7x's 2 TensorCores — but don't
    # shrink blocks below ~_MIN_TB_ROWS rows (per-step overhead would start to show).
    tb = max(min(NU, _MIN_TB_ROWS), min(tb, pl.cdiv(NU, _MIN_STEPS)))
    grid = (pl.cdiv(NU, tb),)

    cost = pl.CostEstimate(
        flops=NU * W * n,
        transcendentals=0,
        bytes_accessed=2 * total_bytes + W * n * itemsize,
    )

    out_flat = pl.pallas_call(
        _attack_add_kernel,
        out_shape=jax.ShapeDtypeStruct((NU, W, n), x.dtype),
        grid_spec=pltpu.PrefetchScalarGridSpec(
            num_scalar_prefetch=0,
            grid=grid,
            in_specs=[
                # X: a (TB, W, n) streaming slab per grid step. Last two dims are the
                # full (W, n) extents, so the (8, 128) tiling constraint is satisfied
                # regardless of TB.
                pl.BlockSpec((tb, W, n), lambda i: (i, 0, 0)),
                # attack: full (W, n) array, same block index every step -> stays
                # resident in VMEM, no per-step re-DMA.
                pl.BlockSpec((W, n), lambda i: (0, 0)),
            ],
            out_specs=pl.BlockSpec((tb, W, n), lambda i: (i, 0, 0)),
        ),
        compiler_params=pltpu.CompilerParams(
            dimension_semantics=("parallel",),
        ),
        cost_estimate=cost,
        # Optionally elide the second HBM allocation when callers never reuse X.
        input_output_aliases=({0: 0} if donate_x else {}),
    )(x_flat, attack)

    return out_flat.reshape(N, U, W, n)


if __name__ == "__main__":
    key = jax.random.PRNGKey(0)
    kx, ka, km, kx2 = jax.random.split(key, 4)

    # Shapes consistent with the module's embedding semantics:
    # W=8 words, n=128 embedding features.  Medium (N=8, U=64 -> 2 MiB) exercises the
    # Pallas streaming path with a multi-step grid; tiny (N=2, U=3) takes the XLA fallback.
    N, U, W, n = 8, 64, 8, 128

    X = jax.random.normal(kx, (N, U, W, n), dtype=jnp.float32)
    # Deterministic init of the attack Parameter (init_attack in the module __init__).
    init_attack = 0.01 * jax.random.normal(ka, (W, n), dtype=jnp.float32)
    # M (mask) is only consumed by the untranslatable trained model; built for completeness.
    M = (jax.random.uniform(km, (N, U, W)) > 0.1).astype(jnp.float32)

    # Pallas path.
    out = bespoke_attack_forward(X, init_attack)
    out = jax.block_until_ready(out)
    ref = X + init_attack[None, None, :, :]
    assert out.shape == (N, U, W, n)
    assert jnp.allclose(out, ref, atol=1e-6), "mismatch vs reference broadcast add (pallas path)"

    # Tiny-input fallback path.
    X_small = jax.random.normal(kx2, (2, 3, W, n), dtype=jnp.float32)
    out_small = jax.block_until_ready(bespoke_attack_forward(X_small, init_attack))
    ref_small = X_small + init_attack[None, None, :, :]
    assert jnp.allclose(out_small, ref_small, atol=1e-6), "mismatch vs reference (fallback path)"

    print("KERNEL_OK")
</pallas_src>

<mosaic_0001>
module attributes {stable_mosaic.version = 11 : i64} {
  func.func @_attack_add_kernel(%arg0: i32, %arg1: memref<128x8x128xf32, #tpu.memory_space<vmem>>, %arg2: memref<8x128xf32, #tpu.memory_space<vmem>>, %arg3: memref<128x8x128xf32, #tpu.memory_space<vmem>>) attributes {dimension_semantics = [#tpu.dimension_semantics<parallel>], iteration_bounds = array<i64: 4>, scalar_prefetch = 0 : i64, scratch_operands = 0 : i64, tpu.core_type = #tpu.core_type<tc>, window_params = [{transform_indices = @transform_0, window_bounds = array<i64: 128, 8, 128>}, {pipeline_mode = #tpu.pipeline_mode<synchronous>, transform_indices = @transform_1, window_bounds = array<i64: 8, 128>}, {transform_indices = @transform_2, window_bounds = array<i64: 128, 8, 128>}]} {
    %c0 = arith.constant 0 : index
    %c0_0 = arith.constant 0 : index
    %c0_1 = arith.constant 0 : index
    %0 = vector.load %arg1[%c0, %c0_0, %c0_1] : memref<128x8x128xf32, #tpu.memory_space<vmem>>, vector<128x8x128xf32>
    %c0_2 = arith.constant 0 : index
    %c0_3 = arith.constant 0 : index
    %1 = vector.load %arg2[%c0_2, %c0_3] : memref<8x128xf32, #tpu.memory_space<vmem>>, vector<8x128xf32>
    %2 = vector.shape_cast %1 : vector<8x128xf32> to vector<1x8x128xf32>
    %3 = vector.broadcast %2 : vector<1x8x128xf32> to vector<128x8x128xf32>
    %4 = arith.addf %0, %3 : vector<128x8x128xf32>
    %c0_4 = arith.constant 0 : index
    %c0_5 = arith.constant 0 : index
    %c0_6 = arith.constant 0 : index
    %5 = vector.load %arg3[%c0_4, %c0_5, %c0_6] : memref<128x8x128xf32, #tpu.memory_space<vmem>>, vector<128x8x128xf32>
    tpu.vector_store %arg3[%c0_4, %c0_5, %c0_6], %4 {strides = array<i32>} : memref<128x8x128xf32, #tpu.memory_space<vmem>>, vector<128x8x128xf32>,
    return
  }
  func.func @transform_0(%arg0: i32) -> (i32, i32, i32) {
    %c0_i32 = arith.constant 0 : i32
    %c0_i32_0 = arith.constant 0 : i32
    %c0_i32_1 = arith.constant 0 : i32
    return %arg0, %c0_i32, %c0_i32_0 : i32, i32, i32
  }
  func.func @transform_1(%arg0: i32) -> (i32, i32) {
    %c0_i32 = arith.constant 0 : i32
    %c0_i32_0 = arith.constant 0 : i32
    %c0_i32_1 = arith.constant 0 : i32
    return %c0_i32, %c0_i32_0 : i32, i32
  }
  func.func @transform_2(%arg0: i32) -> (i32, i32, i32) {
    %c0_i32 = arith.constant 0 : i32
    %c0_i32_0 = arith.constant 0 : i32
    %c0_i32_1 = arith.constant 0 : i32
    return %arg0, %c0_i32, %c0_i32_0 : i32, i32, i32
  }
}

</mosaic_0001>

<llo_original>
// kernel: tpu_custom_call.1
$region0: #{tpu_custom_call.1}
  #allocation0 [shape = 'u32[]', space=smem, size = 0x4, offset = 0x4, fixed_abs, tag = 'smem constant byte address 0x4 - core index']
  #allocation1 [shape = 'u32[144,128]{1,0:T(1,128)}', space=vmem, size = 0x12000, scoped, tag = 'internal scratch']
  %s0 = inlined_call_operand.hbm [shape: f32[512,8,128], index: 0, kind: input, shape index: {}]
  %s1 = inlined_call_operand.hbm [shape: f32[8,128], index: 1, kind: input, shape index: {}]
  %s2 = inlined_call_operand.hbm [shape: f32[512,8,128], index: 2, kind: output, shape index: {}]
  %s3 = sld [smem:[#allocation0]]
  $region49: #{tpu_custom_call.1} parent=0
    _
  %s5 = ssub.s32 1, %s3
  %s6 = scalar_select 0, %s5, %s3
  $region1: #{tpu_custom_call.1} parent=0
    #allocation2 [shape = 'u8[1048576]{0}', space=vmem, size = 0x100000, scoped, tag = 'input window, operand 0']
    #allocation3 [shape = 's32[2]{0}', space=sflag, size = 0x8, scoped, tag = 'scoped memory for tpu_custom_call.1']
    #allocation4 [shape = 's32[2]{0}', space=sflag, size = 0x8, scoped, tag = 'scoped memory for tpu_custom_call.1']
    #allocation5 [shape = 'u8[4096]{0}', space=vmem, size = 0x1000, scoped, tag = 'input window, operand 1, single buffered']
    #allocation6 [shape = 's32[1]{0}', space=sflag, size = 0x4, scoped, tag = 'scoped memory for tpu_custom_call.1']
    #allocation7 [shape = 'u8[1048576]{0}', space=vmem, size = 0x100000, scoped, tag = 'output window, operand 0']
    %7 = vsyncpa [#allocation3], 0
    %s8 = scalar_lea.sflag [#allocation3], 1
    %9 = vsyncpa %s8, 0
    %10 = vsyncpa [#allocation6], 0
    %11 = vsyncpa [#allocation4], 0
    %s12 = scalar_lea.sflag [#allocation4], 1
    %13 = vsyncpa %s12, 0
    loop: start=0, step=1, limit=6
    $region2: #{tpu_custom_call.1} parent=1 // loop_pre_header
      _
    $region3: #{tpu_custom_call.1} parent=1 // loop_header
      %s15 = sphi 0, %s19
      %p16 = scmp.ge.s32.totalorder %s15, 6
      %s25 = sphi 0, %s27
      %s28 = sphi 0, %s25
      %s29 = sphi 0, %s28
      %s45 = sphi 0, %s29
      %s49 = sphi 0, %s49
      %s51 = sphi 0, %s49
      %s52 = sphi 0, %s51
      %s66 = sphi 0, %s52
      %s72 = sphi 0, %s74
      %s75 = sphi 0, %s72
      %s76 = sphi 0, %s75
      %s92 = sphi 0, %s76
    $region4: #{tpu_custom_call.1} parent=1 // loop_header_branch
      %18 = sbr.rel (%p16) target = $region8
    $region5: #{tpu_custom_call.1} parent=1 // loop_body
      %s20 = ssub.s32 %s15, 1
      %s21 = ssub.s32 %s15, 2
      %s22 = sadd.s32 %s15, 1
      %s23 = ssub.s32 %s15, %s22
      %p24 = scmp.eq.s32.totalorder %s23, 0
      %s26 = sadd.s32 %s25, 1
      %s27 = scalar_select %p24, %s25, %s26
      %p30 = pneg %p24
      %p31 = scmp.eq.s32.totalorder %s15, 3
      %p32 = por %p30, %p31
      %p33 = scmp.ne.s32.totalorder %s25, %s28
      %p34 = scmp.eq.s32.totalorder %s15, 0
      %p35 = por %p33, %p34
      %p36 = scmp.ne.s32.totalorder %s25, %s28
      %p37 = scmp.eq.s32.totalorder %s20, 3
      %p38 = por %p36, %p37
      %p39 = scmp.ne.s32.totalorder %s28, %s29
      %p40 = scmp.eq.s32.totalorder %s20, 0
      %p41 = por %p39, %p40
      %p42 = scmp.ne.s32.totalorder %s28, %s29
      %p43 = scmp.eq.s32.totalorder %s21, 3
      %p44 = por %p42, %p43
      %p46 = scmp.ne.s32.totalorder %s29, %s45
      %p47 = scmp.eq.s32.totalorder %s21, 0
      %p48 = por %p46, %p47
      %s50 = sadd.s32 %s49, 1
      %p53 = scmp.eq.s32.totalorder %s15, 3
      %p54 = scmp.ne.s32.totalorder %s49, %s51
      %p55 = scmp.eq.s32.totalorder %s15, 0
      %p56 = por %p54, %p55
      %p57 = scmp.ne.s32.totalorder %s49, %s51
      %p58 = scmp.eq.s32.totalorder %s20, 3
      %p59 = por %p57, %p58
      %p60 = scmp.ne.s32.totalorder %s51, %s52
      %p61 = scmp.eq.s32.totalorder %s20, 0
      %p62 = por %p60, %p61
      %p63 = scmp.ne.s32.totalorder %s51, %s52
      %p64 = scmp.eq.s32.totalorder %s21, 3
      %p65 = por %p63, %p64
      %p67 = scmp.ne.s32.totalorder %s52, %s66
      %p68 = scmp.eq.s32.totalorder %s21, 0
      %p69 = por %p67, %p68
      %s70 = ssub.s32 %s15, %s22
      %p71 = scmp.eq.s32.totalorder %s70, 0
      %s73 = sadd.s32 %s72, 1
      %s74 = scalar_select %p71, %s72, %s73
      %p77 = pneg %p71
      %p78 = scmp.eq.s32.totalorder %s15, 3
      %p79 = por %p77, %p78
      %p80 = scmp.ne.s32.totalorder %s72, %s75
      %p81 = scmp.eq.s32.totalorder %s15, 0
      %p82 = por %p80, %p81
      %p83 = scmp.ne.s32.totalorder %s72, %s75
      %p84 = scmp.eq.s32.totalorder %s20, 3
      %p85 = por %p83, %p84
      %p86 = scmp.ne.s32.totalorder %s75, %s76
      %p87 = scmp.eq.s32.totalorder %s20, 0
      %p88 = por %p86, %p87
      %p89 = scmp.ne.s32.totalorder %s75, %s76
      %p90 = scmp.eq.s32.totalorder %s21, 3
      %p91 = por %p89, %p90
      %p93 = scmp.ne.s32.totalorder %s76, %s92
      %p94 = scmp.eq.s32.totalorder %s21, 0
      %p95 = por %p93, %p94
      %p96 = scmp.le.s32.totalorder 1, %s15
      %p97 = scmp.lt.s32.totalorder %s15, 5
      %p98 = pnand %p96, %p97
      %p99 = pneg %p98
      // Predicated region
      $region9: #{tpu_custom_call.1} parent=5 // pred_check
        _
      $region10: #{tpu_custom_call.1} parent=5 // pred_check_branch
        %101 = sbr.rel (%p98) target = $region12
      $region11: #{tpu_custom_call.1} parent=5 // pred_region
        %s102 = ssub.s32 %s15, 1
        // Predicated region
        $region13: #{tpu_custom_call.1} parent=11 // pred_check
          %p103 = pneg %p62
        $region14: #{tpu_custom_call.1} parent=11 // pred_check_branch
          %105 = sbr.rel (%p103) target = $region16
        $region15: #{tpu_custom_call.1} parent=11 // pred_region
          %s107 = ssub.s32 128, 128
          %108 = vsyncadd [#allocation6], %s107
          %s110 = sshll.u32 [#allocation5], 4
          %s111 = int_to_ptr.vmem [resolvable:$true] %s110
          %113 = dma.hbm_to_vmem [thread:$0]  %s1, 128, %s111, [#allocation6]
        $region16: #{tpu_custom_call.1} parent=11 // pred_fallthru
          _
      $region12: #{tpu_custom_call.1} parent=5 // pred_fallthru
        _
      %p114 = scmp.lt.s32.totalorder %s15, 4
      // Predicated region
      $region17: #{tpu_custom_call.1} parent=5 // pred_check
        %p115 = pneg %p114
      $region18: #{tpu_custom_call.1} parent=5 // pred_check_branch
        %117 = sbr.rel (%p115) target = $region20
      $region19: #{tpu_custom_call.1} parent=5 // pred_region
        // Predicated region
        $region21: #{tpu_custom_call.1} parent=19 // pred_check
          %p118 = pneg %p35
        $region22: #{tpu_custom_call.1} parent=19 // pred_check_branch
          %120 = sbr.rel (%p118) target = $region24
        $region23: #{tpu_custom_call.1} parent=19 // pred_region
          %s121 = sand.u32 %s25, 1
          %s122 = scalar_lea.sflag [#allocation3], %s121
          %s123 = sand.u32 %s25, 1
          %s124 = smul.addr %s123, 1024
          %s125 = scalar_lea.vmem [#allocation2], %s124
          %s126 = smul.u32 128, %s15
          %s128 = ssub.s32 16384, 16384
          %129 = vsyncadd %s122, %s128
          %s130 = smul.addr %s126, 128
          %s131 = scalar_lea.hbm %s0, %s130
          %s132 = sshll.u32 %s125, 4
          %s133 = int_to_ptr.vmem [resolvable:$true] %s132
          %138 = dma.hbm_to_vmem [thread:$0]  %s131, 16384, %s133, %s122, 128, 128, 8
        $region24: #{tpu_custom_call.1} parent=19 // pred_fallthru
          _
      $region20: #{tpu_custom_call.1} parent=5 // pred_fallthru
        _
      %p139 = scmp.le.s32.totalorder 1, %s15
      %p140 = scmp.lt.s32.totalorder %s15, 5
      %p141 = pnand %p139, %p140
      %p142 = pneg %p141
      // Predicated region
      $region25: #{tpu_custom_call.1} parent=5 // pred_check
        _
      $region26: #{tpu_custom_call.1} parent=5 // pred_check_branch
        %144 = sbr.rel (%p141) target = $region28
      $region27: #{tpu_custom_call.1} parent=5 // pred_region
        %s145 = ssub.s32 %s15, 1
        %s146 = sand.u32 %s28, 1
        %s147 = scalar_lea.sflag [#allocation3], %s146
        %s148 = sand.u32 %s28, 1
        %s149 = smul.addr %s148, 1024
        %s150 = scalar_lea.vmem [#allocation2], %s149
        // Predicated region
        $region29: #{tpu_custom_call.1} parent=27 // pred_check
          %p151 = pneg %p41
        $region30: #{tpu_custom_call.1} parent=27 // pred_check_branch
          %153 = sbr.rel (%p151) target = $region32
        $region31: #{tpu_custom_call.1} parent=27 // pred_region
          %154 = dma.done %s147, 16384
        $region32: #{tpu_custom_call.1} parent=27 // pred_fallthru
          _
        // Predicated region
        $region33: #{tpu_custom_call.1} parent=27 // pred_check
          %p155 = pneg %p62
        $region34: #{tpu_custom_call.1} parent=27 // pred_check_branch
          %157 = sbr.rel (%p155) target = $region36
        $region35: #{tpu_custom_call.1} parent=27 // pred_region
          %158 = dma.done [#allocation6], 128
        $region36: #{tpu_custom_call.1} parent=27 // pred_fallthru
          _
        %s159 = sand.u32 %s28, 1
        %s160 = scalar_lea.sflag [#allocation3], %s159
        %s161 = sand.u32 %s28, 1
        %s162 = smul.addr %s161, 1024
        %s163 = scalar_lea.vmem [#allocation2], %s162
        %p164 = pneg %p41
        %p165 = pneg %p38
        %p166 = pneg %p62
        %p167 = pneg %p59
        %p168 = pneg %p88
        %p169 = pneg %p85
        %s170 = sand.u32 %s75, 1
        %s171 = scalar_lea.sflag [#allocation4], %s170
        %s172 = sand.u32 %s75, 1
        %s173 = smul.addr %s172, 1024
        %s174 = scalar_lea.vmem [#allocation7], %s173
        %s175 = smul.u32 128, %s20
        %s176 = smul.u32 128, %s20
        %v177 = vld [vmem:[%s150] sm:$0xff]
        %v178 = vld [vmem:[%s150 + $0x8] sm:$0xff]
        %v179 = vld [vmem:[%s150 + $0x10] sm:$0xff]
        %v180 = vld [vmem:[%s150 + $0x18] sm:$0xff]
        %v181 = vld [vmem:[%s150 + $0x20] sm:$0xff]
        %v182 = vld [vmem:[%s150 + $0x28] sm:$0xff]
        %v183 = vld [vmem:[%s150 + $0x30] sm:$0xff]
        %v184 = vld [vmem:[%s150 + $0x38] sm:$0xff]
        %v185 = vld [vmem:[%s150 + $0x40] sm:$0xff]
        %v186 = vld [vmem:[%s150 + $0x48] sm:$0xff]
        %v187 = vld [vmem:[%s150 + $0x50] sm:$0xff]
        %v188 = vld [vmem:[%s150 + $0x58] sm:$0xff]
        %v189 = vld [vmem:[%s150 + $0x60] sm:$0xff]
        %v190 = vld [vmem:[%s150 + $0x68] sm:$0xff]
        %v191 = vld [vmem:[%s150 + $0x70] sm:$0xff]
        %v192 = vld [vmem:[%s150 + $0x78] sm:$0xff]
        %v193 = vld [vmem:[%s150 + $0x80] sm:$0xff]
        %v194 = vld [vmem:[%s150 + $0x88] sm:$0xff]
        %v195 = vld [vmem:[%s150 + $0x90] sm:$0xff]
        %v196 = vld [vmem:[%s150 + $0x98] sm:$0xff]
        %v197 = vld [vmem:[%s150 + $0xa0] sm:$0xff]
        %v198 = vld [vmem:[%s150 + $0xa8] sm:$0xff]
        %v199 = vld [vmem:[%s150 + $0xb0] sm:$0xff]
        %v200 = vld [vmem:[%s150 + $0xb8] sm:$0xff]
        %v201 = vld [vmem:[%s150 + $0xc0] sm:$0xff]
        %v202 = vld [vmem:[%s150 + $0xc8] sm:$0xff]
        %v203 = vld [vmem:[%s150 + $0xd0] sm:$0xff]
        %v204 = vld [vmem:[%s150 + $0xd8] sm:$0xff]
        %v205 = vld [vmem:[%s150 + $0xe0] sm:$0xff]
        %v206 = vld [vmem:[%s150 + $0xe8] sm:$0xff]
        %v207 = vld [vmem:[%s150 + $0xf0] sm:$0xff]
        %v208 = vld [vmem:[%s150 + $0xf8] sm:$0xff]
        %v209 = vld [vmem:[%s150 + $0x100] sm:$0xff]
        %v210 = vld [vmem:[%s150 + $0x108] sm:$0xff]
        %v211 = vld [vmem:[%s150 + $0x110] sm:$0xff]
        %v212 = vld [vmem:[%s150 + $0x118] sm:$0xff]
        %v213 = vld [vmem:[%s150 + $0x120] sm:$0xff]
        %v214 = vld [vmem:[%s150 + $0x128] sm:$0xff]
        %v215 = vld [vmem:[%s150 + $0x130] sm:$0xff]
        %v216 = vld [vmem:[%s150 + $0x138] sm:$0xff]
        %v217 = vld [vmem:[%s150 + $0x140] sm:$0xff]
        %v218 = vld [vmem:[%s150 + $0x148] sm:$0xff]
        %v219 = vld [vmem:[%s150 + $0x150] sm:$0xff]
        %v220 = vld [vmem:[%s150 + $0x158] sm:$0xff]
        %v221 = vld [vmem:[%s150 + $0x160] sm:$0xff]
        %v222 = vld [vmem:[%s150 + $0x168] sm:$0xff]
        %v223 = vld [vmem:[%s150 + $0x170] sm:$0xff]
        %v224 = vld [vmem:[%s150 + $0x178] sm:$0xff]
        %v225 = vld [vmem:[%s150 + $0x180] sm:$0xff]
        %v226 = vld [vmem:[%s150 + $0x188] sm:$0xff]
        %v227 = vld [vmem:[%s150 + $0x190] sm:$0xff]
        %v228 = vld [vmem:[%s150 + $0x198] sm:$0xff]
        %v229 = vld [vmem:[%s150 + $0x1a0] sm:$0xff]
        %v230 = vld [vmem:[%s150 + $0x1a8] sm:$0xff]
        %v231 = vld [vmem:[%s150 + $0x1b0] sm:$0xff]
        %v232 = vld [vmem:[%s150 + $0x1b8] sm:$0xff]
        %v233 = vld [vmem:[%s150 + $0x1c0] sm:$0xff]
        %v234 = vld [vmem:[%s150 + $0x1c8] sm:$0xff]
        %v235 = vld [vmem:[%s150 + $0x1d0] sm:$0xff]
        %v236 = vld [vmem:[%s150 + $0x1d8] sm:$0xff]
        %v237 = vld [vmem:[%s150 + $0x1e0] sm:$0xff]
        %v238 = vld [vmem:[%s150 + $0x1e8] sm:$0xff]
        %v239 = vld [vmem:[%s150 + $0x1f0] sm:$0xff]
        %v240 = vld [vmem:[%s150 + $0x1f8] sm:$0xff]
        %v241 = vld [vmem:[%s150 + $0x200] sm:$0xff]
        %v242 = vld [vmem:[%s150 + $0x208] sm:$0xff]
        %v243 = vld [vmem:[%s150 + $0x210] sm:$0xff]
        %v244 = vld [vmem:[%s150 + $0x218] sm:$0xff]
        %v245 = vld [vmem:[%s150 + $0x220] sm:$0xff]
        %v246 = vld [vmem:[%s150 + $0x228] sm:$0xff]
        %v247 = vld [vmem:[%s150 + $0x230] sm:$0xff]
        %v248 = vld [vmem:[%s150 + $0x238] sm:$0xff]
        %v249 = vld [vmem:[%s150 + $0x240] sm:$0xff]
        %v250 = vld [vmem:[%s150 + $0x248] sm:$0xff]
        %v251 = vld [vmem:[%s150 + $0x250] sm:$0xff]
        %v252 = vld [vmem:[%s150 + $0x258] sm:$0xff]
        %v253 = vld [vmem:[%s150 + $0x260] sm:$0xff]
        %v254 = vld [vmem:[%s150 + $0x268] sm:$0xff]
        %v255 = vld [vmem:[%s150 + $0x270] sm:$0xff]
        %v256 = vld [vmem:[%s150 + $0x278] sm:$0xff]
        %v257 = vld [vmem:[%s150 + $0x280] sm:$0xff]
        %v258 = vld [vmem:[%s150 + $0x288] sm:$0xff]
        %v259 = vld [vmem:[%s150 + $0x290] sm:$0xff]
        %v260 = vld [vmem:[%s150 + $0x298] sm:$0xff]
        %v261 = vld [vmem:[%s150 + $0x2a0] sm:$0xff]
        %v262 = vld [vmem:[%s150 + $0x2a8] sm:$0xff]
        %v263 = vld [vmem:[%s150 + $0x2b0] sm:$0xff]
        %v264 = vld [vmem:[%s150 + $0x2b8] sm:$0xff]
        %v265 = vld [vmem:[%s150 + $0x2c0] sm:$0xff]
        %v266 = vld [vmem:[%s150 + $0x2c8] sm:$0xff]
        %v267 = vld [vmem:[%s150 + $0x2d0] sm:$0xff]
        %v268 = vld [vmem:[%s150 + $0x2d8] sm:$0xff]
        %v269 = vld [vmem:[%s150 + $0x2e0] sm:$0xff]
        %v270 = vld [vmem:[%s150 + $0x2e8] sm:$0xff]
        %v271 = vld [vmem:[%s150 + $0x2f0] sm:$0xff]
        %v272 = vld [vmem:[%s150 + $0x2f8] sm:$0xff]
        %v273 = vld [vmem:[%s150 + $0x300] sm:$0xff]
        %v274 = vld [vmem:[%s150 + $0x308] sm:$0xff]
        %v275 = vld [vmem:[%s150 + $0x310] sm:$0xff]
        %v276 = vld [vmem:[%s150 + $0x318] sm:$0xff]
        %v277 = vld [vmem:[%s150 + $0x320] sm:$0xff]
        %v278 = vld [vmem:[%s150 + $0x328] sm:$0xff]
        %v279 = vld [vmem:[%s150 + $0x330] sm:$0xff]
        %v280 = vld [vmem:[%s150 + $0x338] sm:$0xff]
        %v281 = vld [vmem:[%s150 + $0x340] sm:$0xff]
        %v282 = vld [vmem:[%s150 + $0x348] sm:$0xff]
        %v283 = vld [vmem:[%s150 + $0x350] sm:$0xff]
        %v284 = vld [vmem:[%s150 + $0x358] sm:$0xff]
        %v285 = vld [vmem:[%s150 + $0x360] sm:$0xff]
        %v286 = vld [vmem:[%s150 + $0x368] sm:$0xff]
        %v287 = vld [vmem:[%s150 + $0x370] sm:$0xff]
        %v288 = vld [vmem:[%s150 + $0x378] sm:$0xff]
        %v289 = vld [vmem:[%s150 + $0x380] sm:$0xff]
        %v290 = vld [vmem:[%s150 + $0x388] sm:$0xff]
        %v291 = vld [vmem:[%s150 + $0x390] sm:$0xff]
        %v292 = vld [vmem:[%s150 + $0x398] sm:$0xff]
        %v293 = vld [vmem:[%s150 + $0x3a0] sm:$0xff]
        %v294 = vld [vmem:[%s150 + $0x3a8] sm:$0xff]
        %v295 = vld [vmem:[%s150 + $0x3b0] sm:$0xff]
        %v296 = vld [vmem:[%s150 + $0x3b8] sm:$0xff]
        %v297 = vld [vmem:[%s150 + $0x3c0] sm:$0xff]
        %v298 = vld [vmem:[%s150 + $0x3c8] sm:$0xff]
        %v299 = vld [vmem:[%s150 + $0x3d0] sm:$0xff]
        %v300 = vld [vmem:[%s150 + $0x3d8] sm:$0xff]
        %v301 = vld [vmem:[%s150 + $0x3e0] sm:$0xff]
        %v302 = vld [vmem:[%s150 + $0x3e8] sm:$0xff]
        %v303 = vld [vmem:[%s150 + $0x3f0] sm:$0xff]
        %v304 = vld [vmem:[%s150 + $0x3f8] sm:$0xff]
        %v305 = vld [vmem:[#allocation5] sm:$0xff]
        %v306 = vadd.f32 %v177, %v305
        %v307 = vadd.f32 %v178, %v305
        %v308 = vadd.f32 %v179, %v305
        %v309 = vadd.f32 %v180, %v305
        %v310 = vadd.f32 %v181, %v305
        %v311 = vadd.f32 %v182, %v305
        %v312 = vadd.f32 %v183, %v305
        %v313 = vadd.f32 %v184, %v305
        %v314 = vadd.f32 %v185, %v305
        %v315 = vadd.f32 %v186, %v305
        %v316 = vadd.f32 %v187, %v305
        %v317 = vadd.f32 %v188, %v305
        %v318 = vadd.f32 %v189, %v305
        %v319 = vadd.f32 %v190, %v305
        %v320 = vadd.f32 %v191, %v305
        %v321 = vadd.f32 %v192, %v305
        %v322 = vadd.f32 %v193, %v305
        %v323 = vadd.f32 %v194, %v305
        %v324 = vadd.f32 %v195, %v305
        %v325 = vadd.f32 %v196, %v305
        %v326 = vadd.f32 %v197, %v305
        %v327 = vadd.f32 %v198, %v305
        %v328 = vadd.f32 %v199, %v305
        %v329 = vadd.f32 %v200, %v305
        %v330 = vadd.f32 %v201, %v305
        %v331 = vadd.f32 %v202, %v305
        %v332 = vadd.f32 %v203, %v305
        %v333 = vadd.f32 %v204, %v305
        %v334 = vadd.f32 %v205, %v305
        %v335 = vadd.f32 %v206, %v305
        %v336 = vadd.f32 %v207, %v305
        %v337 = vadd.f32 %v208, %v305
        %v338 = vadd.f32 %v209, %v305
        %v339 = vadd.f32 %v210, %v305
        %v340 = vadd.f32 %v211, %v305
        %v341 = vadd.f32 %v212, %v305
        %v342 = vadd.f32 %v213, %v305
        %v343 = vadd.f32 %v214, %v305
        %v344 = vadd.f32 %v215, %v305
        %v345 = vadd.f32 %v216, %v305
        %v346 = vadd.f32 %v217, %v305
        %v347 = vadd.f32 %v218, %v305
        %v348 = vadd.f32 %v219, %v305
        %v349 = vadd.f32 %v220, %v305
        %v350 = vadd.f32 %v221, %v305
        %v351 = vadd.f32 %v222, %v305
        %v352 = vadd.f32 %v223, %v305
        %v353 = vadd.f32 %v224, %v305
        %v354 = vadd.f32 %v225, %v305
        %v355 = vadd.f32 %v226, %v305
        %v356 = vadd.f32 %v227, %v305
        %v357 = vadd.f32 %v228, %v305
        %v358 = vadd.f32 %v229, %v305
        %v359 = vadd.f32 %v230, %v305
        %v360 = vadd.f32 %v231, %v305
        %v361 = vadd.f32 %v232, %v305
        %v362 = vadd.f32 %v233, %v305
        %v363 = vadd.f32 %v234, %v305
        %v364 = vadd.f32 %v235, %v305
        %v365 = vadd.f32 %v236, %v305
        %v366 = vadd.f32 %v237, %v305
        %v367 = vadd.f32 %v238, %v305
        %v368 = vadd.f32 %v239, %v305
        %v369 = vadd.f32 %v240, %v305
        %v370 = vadd.f32 %v241, %v305
        %v371 = vadd.f32 %v242, %v305
        %v372 = vadd.f32 %v243, %v305
        %v373 = vadd.f32 %v244, %v305
        %v374 = vadd.f32 %v245, %v305
        %v375 = vadd.f32 %v246, %v305
        %v376 = vadd.f32 %v247, %v305
        %v377 = vadd.f32 %v248, %v305
        %v378 = vadd.f32 %v249, %v305
        %v379 = vadd.f32 %v250, %v305
        %v380 = vadd.f32 %v251, %v305
        %v381 = vadd.f32 %v252, %v305
        %v382 = vadd.f32 %v253, %v305
        %v383 = vadd.f32 %v254, %v305
        %v384 = vadd.f32 %v255, %v305
        %v385 = vadd.f32 %v256, %v305
        %v386 = vadd.f32 %v257, %v305
        %v387 = vadd.f32 %v258, %v305
        %v388 = vadd.f32 %v259, %v305
        %v389 = vadd.f32 %v260, %v305
        %v390 = vadd.f32 %v261, %v305
        %v391 = vadd.f32 %v262, %v305
        %v392 = vadd.f32 %v263, %v305
        %v393 = vadd.f32 %v264, %v305
        %v394 = vadd.f32 %v265, %v305
        %v395 = vadd.f32 %v266, %v305
        %v396 = vadd.f32 %v267, %v305
        %v397 = vadd.f32 %v268, %v305
        %v398 = vadd.f32 %v269, %v305
        %v399 = vadd.f32 %v270, %v305
        %v400 = vadd.f32 %v271, %v305
        %v401 = vadd.f32 %v272, %v305
        %v402 = vadd.f32 %v273, %v305
        %v403 = vadd.f32 %v274, %v305
        %v404 = vadd.f32 %v275, %v305
        %v405 = vadd.f32 %v276, %v305
        %v406 = vadd.f32 %v277, %v305
        %v407 = vadd.f32 %v278, %v305
        %v408 = vadd.f32 %v279, %v305
        %v409 = vadd.f32 %v280, %v305
        %v410 = vadd.f32 %v281, %v305
        %v411 = vadd.f32 %v282, %v305
        %v412 = vadd.f32 %v283, %v305
        %v413 = vadd.f32 %v284, %v305
        %v414 = vadd.f32 %v285, %v305
        %v415 = vadd.f32 %v286, %v305
        %v416 = vadd.f32 %v287, %v305
        %v417 = vadd.f32 %v288, %v305
        %v418 = vadd.f32 %v289, %v305
        %v419 = vadd.f32 %v290, %v305
        %v420 = vadd.f32 %v291, %v305
        %v421 = vadd.f32 %v292, %v305
        %v422 = vadd.f32 %v293, %v305
        %v423 = vadd.f32 %v294, %v305
        %v424 = vadd.f32 %v295, %v305
        %v425 = vadd.f32 %v296, %v305
        %v426 = vadd.f32 %v297, %v305
        %v427 = vadd.f32 %v298, %v305
        %v428 = vadd.f32 %v299, %v305
        %v429 = vadd.f32 %v300, %v305
        %v430 = vadd.f32 %v301, %v305
        %v431 = vadd.f32 %v302, %v305
        %v432 = vadd.f32 %v303, %v305
        %v433 = vadd.f32 %v304, %v305
        %434 = vst [vmem:[%s174] sm:$0xff] %v306
        %435 = vst [vmem:[%s174 + $0x8] sm:$0xff] %v307
        %436 = vst [vmem:[%s174 + $0x10] sm:$0xff] %v308
        %437 = vst [vmem:[%s174 + $0x18] sm:$0xff] %v309
        %438 = vst [vmem:[%s174 + $0x20] sm:$0xff] %v310
        %439 = vst [vmem:[%s174 + $0x28] sm:$0xff] %v311
        %440 = vst [vmem:[%s174 + $0x30] sm:$0xff] %v312
        %441 = vst [vmem:[%s174 + $0x38] sm:$0xff] %v313
        %442 = vst [vmem:[%s174 + $0x40] sm:$0xff] %v314
        %443 = vst [vmem:[%s174 + $0x48] sm:$0xff] %v315
        %444 = vst [vmem:[%s174 + $0x50] sm:$0xff] %v316
        %445 = vst [vmem:[%s174 + $0x58] sm:$0xff] %v317
        %446 = vst [vmem:[%s174 + $0x60] sm:$0xff] %v318
        %447 = vst [vmem:[%s174 + $0x68] sm:$0xff] %v319
        %448 = vst [vmem:[%s174 + $0x70] sm:$0xff] %v320
        %449 = vst [vmem:[%s174 + $0x78] sm:$0xff] %v321
        %450 = vst [vmem:[%s174 + $0x80] sm:$0xff] %v322
        %451 = vst [vmem:[%s174 + $0x88] sm:$0xff] %v323
        %452 = vst [vmem:[%s174 + $0x90] sm:$0xff] %v324
        %453 = vst [vmem:[%s174 + $0x98] sm:$0xff] %v325
        %454 = vst [vmem:[%s174 + $0xa0] sm:$0xff] %v326
        %455 = vst [vmem:[%s174 + $0xa8] sm:$0xff] %v327
        %456 = vst [vmem:[%s174 + $0xb0] sm:$0xff] %v328
        %457 = vst [vmem:[%s174 + $0xb8] sm:$0xff] %v329
        %458 = vst [vmem:[%s174 + $0xc0] sm:$0xff] %v330
        %459 = vst [vmem:[%s174 + $0xc8] sm:$0xff] %v331
        %460 = vst [vmem:[%s174 + $0xd0] sm:$0xff] %v332
        %461 = vst [vmem:[%s174 + $0xd8] sm:$0xff] %v333
        %462 = vst [vmem:[%s174 + $0xe0] sm:$0xff] %v334
        %463 = vst [vmem:[%s174 + $0xe8] sm:$0xff] %v335
        %464 = vst [vmem:[%s174 + $0xf0] sm:$0xff] %v336
        %465 = vst [vmem:[%s174 + $0xf8] sm:$0xff] %v337
        %466 = vst [vmem:[%s174 + $0x100] sm:$0xff] %v338
        %467 = vst [vmem:[%s174 + $0x108] sm:$0xff] %v339
        %468 = vst [vmem:[%s174 + $0x110] sm:$0xff] %v340
        %469 = vst [vmem:[%s174 + $0x118] sm:$0xff] %v341
        %470 = vst [vmem:[%s174 + $0x120] sm:$0xff] %v342
        %471 = vst [vmem:[%s174 + $0x128] sm:$0xff] %v343
        %472 = vst [vmem:[%s174 + $0x130] sm:$0xff] %v344
        %473 = vst [vmem:[%s174 + $0x138] sm:$0xff] %v345
        %474 = vst [vmem:[%s174 + $0x140] sm:$0xff] %v346
        %475 = vst [vmem:[%s174 + $0x148] sm:$0xff] %v347
        %476 = vst [vmem:[%s174 + $0x150] sm:$0xff] %v348
        %477 = vst [vmem:[%s174 + $0x158] sm:$0xff] %v349
        %478 = vst [vmem:[%s174 + $0x160] sm:$0xff] %v350
        %479 = vst [vmem:[%s174 + $0x168] sm:$0xff] %v351
        %480 = vst [vmem:[%s174 + $0x170] sm:$0xff] %v352
        %481 = vst [vmem:[%s174 + $0x178] sm:$0xff] %v353
        %482 = vst [vmem:[%s174 + $0x180] sm:$0xff] %v354
        %483 = vst [vmem:[%s174 + $0x188] sm:$0xff] %v355
        %484 = vst [vmem:[%s174 + $0x190] sm:$0xff] %v356
        %485 = vst [vmem:[%s174 + $0x198] sm:$0xff] %v357
        %486 = vst [vmem:[%s174 + $0x1a0] sm:$0xff] %v358
        %487 = vst [vmem:[%s174 + $0x1a8] sm:$0xff] %v359
        %488 = vst [vmem:[%s174 + $0x1b0] sm:$0xff] %v360
        %489 = vst [vmem:[%s174 + $0x1b8] sm:$0xff] %v361
        %490 = vst [vmem:[%s174 + $0x1c0] sm:$0xff] %v362
        %491 = vst [vmem:[%s174 + $0x1c8] sm:$0xff] %v363
        %492 = vst [vmem:[%s174 + $0x1d0] sm:$0xff] %v364
        %493 = vst [vmem:[%s174 + $0x1d8] sm:$0xff] %v365
        %494 = vst [vmem:[%s174 + $0x1e0] sm:$0xff] %v366
        %495 = vst [vmem:[%s174 + $0x1e8] sm:$0xff] %v367
        %496 = vst [vmem:[%s174 + $0x1f0] sm:$0xff] %v368
        %497 = vst [vmem:[%s174 + $0x1f8] sm:$0xff] %v369
        %498 = vst [vmem:[%s174 + $0x200] sm:$0xff] %v370
        %499 = vst [vmem:[%s174 + $0x208] sm:$0xff] %v371
        %500 = vst [vmem:[%s174 + $0x210] sm:$0xff] %v372
        %501 = vst [vmem:[%s174 + $0x218] sm:$0xff] %v373
        %502 = vst [vmem:[%s174 + $0x220] sm:$0xff] %v374
        %503 = vst [vmem:[%s174 + $0x228] sm:$0xff] %v375
        %504 = vst [vmem:[%s174 + $0x230] sm:$0xff] %v376
        %505 = vst [vmem:[%s174 + $0x238] sm:$0xff] %v377
        %506 = vst [vmem:[%s174 + $0x240] sm:$0xff] %v378
        %507 = vst [vmem:[%s174 + $0x248] sm:$0xff] %v379
        %508 = vst [vmem:[%s174 + $0x250] sm:$0xff] %v380
        %509 = vst [vmem:[%s174 + $0x258] sm:$0xff] %v381
        %510 = vst [vmem:[%s174 + $0x260] sm:$0xff] %v382
        %511 = vst [vmem:[%s174 + $0x268] sm:$0xff] %v383
        %512 = vst [vmem:[%s174 + $0x270] sm:$0xff] %v384
        %513 = vst [vmem:[%s174 + $0x278] sm:$0xff] %v385
        %514 = vst [vmem:[%s174 + $0x280] sm:$0xff] %v386
        %515 = vst [vmem:[%s174 + $0x288] sm:$0xff] %v387
        %516 = vst [vmem:[%s174 + $0x290] sm:$0xff] %v388
        %517 = vst [vmem:[%s174 + $0x298] sm:$0xff] %v389
        %518 = vst [vmem:[%s174 + $0x2a0] sm:$0xff] %v390
        %519 = vst [vmem:[%s174 + $0x2a8] sm:$0xff] %v391
        %520 = vst [vmem:[%s174 + $0x2b0] sm:$0xff] %v392
        %521 = vst [vmem:[%s174 + $0x2b8] sm:$0xff] %v393
        %522 = vst [vmem:[%s174 + $0x2c0] sm:$0xff] %v394
        %523 = vst [vmem:[%s174 + $0x2c8] sm:$0xff] %v395
        %524 = vst [vmem:[%s174 + $0x2d0] sm:$0xff] %v396
        %525 = vst [vmem:[%s174 + $0x2d8] sm:$0xff] %v397
        %526 = vst [vmem:[%s174 + $0x2e0] sm:$0xff] %v398
        %527 = vst [vmem:[%s174 + $0x2e8] sm:$0xff] %v399
        %528 = vst [vmem:[%s174 + $0x2f0] sm:$0xff] %v400
        %529 = vst [vmem:[%s174 + $0x2f8] sm:$0xff] %v401
        %530 = vst [vmem:[%s174 + $0x300] sm:$0xff] %v402
        %531 = vst [vmem:[%s174 + $0x308] sm:$0xff] %v403
        %532 = vst [vmem:[%s174 + $0x310] sm:$0xff] %v404
        %533 = vst [vmem:[%s174 + $0x318] sm:$0xff] %v405
        %534 = vst [vmem:[%s174 + $0x320] sm:$0xff] %v406
        %535 = vst [vmem:[%s174 + $0x328] sm:$0xff] %v407
        %536 = vst [vmem:[%s174 + $0x330] sm:$0xff] %v408
        %537 = vst [vmem:[%s174 + $0x338] sm:$0xff] %v409
        %538 = vst [vmem:[%s174 + $0x340] sm:$0xff] %v410
        %539 = vst [vmem:[%s174 + $0x348] sm:$0xff] %v411
        %540 = vst [vmem:[%s174 + $0x350] sm:$0xff] %v412
        %541 = vst [vmem:[%s174 + $0x358] sm:$0xff] %v413
        %542 = vst [vmem:[%s174 + $0x360] sm:$0xff] %v414
        %543 = vst [vmem:[%s174 + $0x368] sm:$0xff] %v415
        %544 = vst [vmem:[%s174 + $0x370] sm:$0xff] %v416
        %545 = vst [vmem:[%s174 + $0x378] sm:$0xff] %v417
        %546 = vst [vmem:[%s174 + $0x380] sm:$0xff] %v418
        %547 = vst [vmem:[%s174 + $0x388] sm:$0xff] %v419
        %548 = vst [vmem:[%s174 + $0x390] sm:$0xff] %v420
        %549 = vst [vmem:[%s174 + $0x398] sm:$0xff] %v421
        %550 = vst [vmem:[%s174 + $0x3a0] sm:$0xff] %v422
        %551 = vst [vmem:[%s174 + $0x3a8] sm:$0xff] %v423
        %552 = vst [vmem:[%s174 + $0x3b0] sm:$0xff] %v424
        %553 = vst [vmem:[%s174 + $0x3b8] sm:$0xff] %v425
        %554 = vst [vmem:[%s174 + $0x3c0] sm:$0xff] %v426
        %555 = vst [vmem:[%s174 + $0x3c8] sm:$0xff] %v427
        %556 = vst [vmem:[%s174 + $0x3d0] sm:$0xff] %v428
        %557 = vst [vmem:[%s174 + $0x3d8] sm:$0xff] %v429
        %558 = vst [vmem:[%s174 + $0x3e0] sm:$0xff] %v430
        %559 = vst [vmem:[%s174 + $0x3e8] sm:$0xff] %v431
        %560 = vst [vmem:[%s174 + $0x3f0] sm:$0xff] %v432
        %561 = vst [vmem:[%s174 + $0x3f8] sm:$0xff] %v433
        %s562 = sand.u32 %s75, 1
        %s563 = scalar_lea.sflag [#allocation4], %s562
        %s564 = sand.u32 %s75, 1
        %s565 = smul.addr %s564, 1024
        %s566 = scalar_lea.vmem [#allocation7], %s565
        // Predicated region
        $region37: #{tpu_custom_call.1} parent=27 // pred_check
          %p567 = pneg %p85
        $region38: #{tpu_custom_call.1} parent=27 // pred_check_branch
          %569 = sbr.rel (%p567) target = $region40
        $region39: #{tpu_custom_call.1} parent=27 // pred_region
          %s570 = smul.u32 128, %s20
          %s572 = ssub.s32 16384, 16384
          %573 = vsyncadd %s563, %s572
          %s574 = smul.addr %s570, 128
          %s575 = scalar_lea.hbm %s2, %s574
          %s576 = sshll.u32 %s566, 4
          %s577 = int_to_ptr.vmem [resolvable:$true] %s576
          %582 = dma.vmem_to_hbm [thread:$0]  %s577, 16384, %s575, %s563, 128, 128, 8
        $region40: #{tpu_custom_call.1} parent=27 // pred_fallthru
          _
      $region28: #{tpu_custom_call.1} parent=5 // pred_fallthru
        _
      %p583 = scmp.le.s32.totalorder 2, %s15
      // Predicated region
      $region41: #{tpu_custom_call.1} parent=5 // pred_check
        %p584 = pneg %p583
      $region42: #{tpu_custom_call.1} parent=5 // pred_check_branch
        %586 = sbr.rel (%p584) target = $region44
      $region43: #{tpu_custom_call.1} parent=5 // pred_region
        %s587 = ssub.s32 %s15, 2
        // Predicated region
        $region45: #{tpu_custom_call.1} parent=43 // pred_check
          %p588 = pneg %p91
        $region46: #{tpu_custom_call.1} parent=43 // pred_check_branch
          %590 = sbr.rel (%p588) target = $region48
        $region47: #{tpu_custom_call.1} parent=43 // pred_region
          %s591 = sand.u32 %s76, 1
          %s592 = scalar_lea.sflag [#allocation4], %s591
          %s593 = sand.u32 %s76, 1
          %s594 = smul.addr %s593, 1024
          %s595 = scalar_lea.vmem [#allocation7], %s594
          %596 = dma.done %s592, 16384
        $region48: #{tpu_custom_call.1} parent=43 // pred_fallthru
          _
      $region44: #{tpu_custom_call.1} parent=5 // pred_fallthru
        _
    $region6: #{tpu_custom_call.1} parent=1 // loop_footer
      %s19 = sadd.s32 1, %s15
    $region7: #{tpu_custom_call.1} parent=1 // loop_footer_branch
      %14 = sbr.rel target = $region3
    $region8: #{tpu_custom_call.1} parent=1 // loop_exit
      _
    %597 = vsyncpa [#allocation3], 1
    %s598 = scalar_lea.sflag [#allocation3], 1
    %599 = vsyncpa %s598, 1
    %600 = vsyncpa [#allocation6], 1
    %601 = vsyncpa [#allocation4], 1
    %s602 = scalar_lea.sflag [#allocation4], 1
    %603 = vsyncpa %s602, 1

</llo_original>
